<compile_context>
chip_gen: v6e
topology: v6e:2x2x1
jax: 0.10.0
libtpu: 0.0.40
codegen_flags: <defaults>
</compile_context>

<pallas_src>
import math

import jax
import jax.numpy as jnp
from jax import lax
from jax.experimental import pallas as pl
from jax.experimental.pallas import tpu as pltpu


def _embedding_kernel(x_ref, w_ref, posb_ref, o_ref):
    # x_ref:    (TR, F)   bf16   -- TR = TB*S rows of flattened (B*S, F) input
    # w_ref:    (Dp, F)   bf16   -- nn.Linear weight (row-padded to Dp), resident
    # posb_ref: (TR, Dp)  f32    -- tiled (pos_embedding[:S] + bias), resident
    # o_ref:    (TR, Dp)  f32
    y = lax.dot_general(
        x_ref[...], w_ref[...],
        dimension_numbers=(((1,), (1,)), ((), ())),   # x @ W^T, no transpose materialized
        preferred_element_type=jnp.float32,
    )
    o_ref[...] = (y + posb_ref[...]).astype(o_ref.dtype)


def _physical_vmem_bytes():
    try:
        return int(pltpu.get_tpu_info().vmem_capacity_bytes)
    except Exception:
        return 64 << 20   # conservative fallback (v7x-sized VMEM)


def _pick_tb(B, S, F, Dp, vmem_budget_bytes, target_out_tile_bytes):
    """Largest batch-tile TB such that the output tile is ~target bytes, the
    double-buffered VMEM footprint fits the budget, rows stay sublane-aligned,
    and the grid keeps >= 2 steps (feeds both v7x TensorCores)."""

    def footprint(tb):
        tr = tb * S
        x_t = tr * F * 2            # bf16 input tile
        o_t = tr * Dp * 4           # f32 output tile
        w_t = Dp * F * 2            # bf16 weight (resident)
        p_t = tr * Dp * 4           # f32 pos+bias (resident)
        return 2 * (x_t + o_t) + 2 * w_t + 2 * p_t

    max_tb = max(1, (B + 1) // 2)   # >= 2 grid steps whenever B >= 2
    best = None
    for cand in range(1, max_tb + 1):
        if (cand * S) % 8 != 0:     # keep block rows sublane-aligned
            continue
        if footprint(cand) > vmem_budget_bytes:
            break
        if best is None or cand * S * Dp * 4 <= target_out_tile_bytes:
            best = cand
    if best is None:
        # Degenerate fallback: single full-extent block (block dims == array dims,
        # so the (8,128) divisibility rule does not apply).
        best = B
    return best


def embedding_forward(x, weight, bias, pos_embedding, *,
                      out_dtype=jnp.float32,
                      target_out_tile_bytes=4 << 20):
    """Forward pass of Embedding (eval mode).

    x:             (B, S, F) f32
    weight:        (D, F)    f32   (nn.Linear weight)
    bias:          (D,)      f32
    pos_embedding: (max_len, D) f32
    returns:       (B, S, D) `out_dtype` (f32 by default; pass bf16 to halve output HBM traffic)
    """
    B, S, F = x.shape
    D = weight.shape[0]
    max_len = pos_embedding.shape[0]
    assert S <= max_len, f"sequence length {S} exceeds positional table max_len {max_len}"

    # Keep the dominant output stream lane-dense: pad d_model up to a multiple of 128.
    Dp = ((D + 127) // 128) * 128

    # Fold bias into the positional slice (PyTorch slice semantics: pos_embedding[:S]).
    posb = (pos_embedding[:S] + bias[None, :]).astype(jnp.float32)       # (S, D)
    if Dp != D:
        weight = jnp.pad(weight, ((0, Dp - D), (0, 0)))
        posb = jnp.pad(posb, ((0, 0), (0, Dp - D)))

    # bf16 MXU inputs, f32 accumulation. Flatten x in the wrapper (free layout plumbing).
    # TODO(synk): bf16 input rounding is a deliberate precision change vs the f32 nn.Linear.
    xb = x.reshape(B * S, F).astype(jnp.bfloat16)                        # (B*S, F)
    wb = weight.astype(jnp.bfloat16)                                     # (Dp, F)

    phys_vmem = _physical_vmem_bytes()
    vmem_budget = int(phys_vmem * 0.65)        # ~42 MiB on v7x, ~83 MiB on v5e/v6e
    TB = _pick_tb(B, S, F, Dp, vmem_budget, target_out_tile_bytes)
    TR = TB * S

    # Pre-tiled positional+bias operand: one resident (TR, Dp) slab, no in-kernel
    # broadcast/reshape. Periodic with period S, so ragged last blocks stay correct.
    posb_t = jnp.tile(posb, (TB, 1))                                     # (TR, Dp)

    n_rows = B * S
    grid = (pl.cdiv(n_rows, TR),)              # masked ragged last block if TB doesn't divide B

    vmem_needed = (2 * (TR * F * 2 + TR * Dp * 4)     # double-buffered x + out tiles
                   + 2 * (Dp * F * 2)                 # resident weight
                   + 2 * (TR * Dp * 4))               # resident pos+bias
    vmem_limit = int(min(phys_vmem * 0.9,
                         max(32 << 20, int(vmem_needed * 1.25))))

    out = pl.pallas_call(
        _embedding_kernel,
        out_shape=jax.ShapeDtypeStruct((n_rows, Dp), out_dtype),
        grid_spec=pltpu.PrefetchScalarGridSpec(
            num_scalar_prefetch=0,
            grid=grid,
            in_specs=[
                pl.BlockSpec((TR, F), lambda i: (i, 0)),    # x rows
                pl.BlockSpec((Dp, F), lambda i: (0, 0)),    # weight, resident
                pl.BlockSpec((TR, Dp), lambda i: (0, 0)),   # pos+bias, resident
            ],
            out_specs=pl.BlockSpec((TR, Dp), lambda i: (i, 0)),
        ),
        compiler_params=pltpu.CompilerParams(
            dimension_semantics=("parallel",),
            vmem_limit_bytes=vmem_limit,
        ),
    )(xb, wb, posb_t)

    out = out.reshape(B, S, Dp)
    if Dp != D:
        out = out[:, :, :D]
    return out


def make_positional_embedding(d_model: int, maxlen: int) -> jnp.ndarray:
    """Reproduces PositionalEncoding.__init__ buffer exactly (without the leading 1-dim)."""
    angle = jnp.exp(-jnp.arange(0, d_model, 2, dtype=jnp.float32)
                    * math.log(10000.0) / d_model)                      # (D/2,)
    pos = jnp.arange(0, maxlen, dtype=jnp.float32).reshape(maxlen, 1)   # (maxlen, 1)
    pe = jnp.zeros((maxlen, d_model), dtype=jnp.float32)
    pe = pe.at[:, 0::2].set(jnp.sin(pos * angle))
    pe = pe.at[:, 1::2].set(jnp.cos(pos * angle))
    return pe


if __name__ == "__main__":
    # Small shapes consistent with the module's forward: x is (batch, seq, in_features)
    B, S, F, D = 2, 8, 32, 128
    MAX_LEN = 64

    key = jax.random.PRNGKey(0)
    kx, kw, kb = jax.random.split(key, 3)

    x = jax.random.normal(kx, (B, S, F), dtype=jnp.float32)

    # Deterministic nn.Linear-style init: U(-1/sqrt(F), 1/sqrt(F))
    bound = 1.0 / math.sqrt(F)
    weight = jax.random.uniform(kw, (D, F), minval=-bound, maxval=bound,
                                dtype=jnp.float32)
    bias = jax.random.uniform(kb, (D,), minval=-bound, maxval=bound,
                              dtype=jnp.float32)

    pos_embedding = make_positional_embedding(D, MAX_LEN)

    out = embedding_forward(x, weight, bias, pos_embedding)
    out = jax.block_until_ready(out)

    # Reference: same bf16 input rounding as the kernel, f32 accumulation.
    x_bf = x.astype(jnp.bfloat16).astype(jnp.float32)
    w_bf = weight.astype(jnp.bfloat16).astype(jnp.float32)
    ref = jnp.einsum("bsf,df->bsd", x_bf, w_bf,
                     precision=lax.Precision.HIGHEST) \
          + bias[None, None, :] + pos_embedding[None, :S, :]

    assert out.shape == (B, S, D)
    assert jnp.allclose(out, ref, atol=2e-3, rtol=2e-3)

    print("KERNEL_OK")
</pallas_src>

<mosaic_0001>
module attributes {stable_mosaic.version = 11 : i64} {
  func.func @_embedding_kernel(%arg0: i32, %arg1: memref<8x32xbf16, #tpu.memory_space<vmem>>, %arg2: memref<128x32xbf16, #tpu.memory_space<vmem>>, %arg3: memref<8x128xf32, #tpu.memory_space<vmem>>, %arg4: memref<8x128xf32, #tpu.memory_space<vmem>>) attributes {dimension_semantics = [#tpu.dimension_semantics<parallel>], iteration_bounds = array<i64: 2>, scalar_prefetch = 0 : i64, scratch_operands = 0 : i64, tpu.core_type = #tpu.core_type<tc>, window_params = [{transform_indices = @transform_0, window_bounds = array<i64: 8, 32>}, {pipeline_mode = #tpu.pipeline_mode<synchronous>, transform_indices = @transform_1, window_bounds = array<i64: 128, 32>}, {pipeline_mode = #tpu.pipeline_mode<synchronous>, transform_indices = @transform_2, window_bounds = array<i64: 8, 128>}, {transform_indices = @transform_3, window_bounds = array<i64: 8, 128>}]} {
    %c0 = arith.constant 0 : index
    %c0_0 = arith.constant 0 : index
    %0 = vector.load %arg1[%c0, %c0_0] : memref<8x32xbf16, #tpu.memory_space<vmem>>, vector<8x32xbf16>
    %c0_1 = arith.constant 0 : index
    %c0_2 = arith.constant 0 : index
    %1 = vector.load %arg2[%c0_1, %c0_2] : memref<128x32xbf16, #tpu.memory_space<vmem>>, vector<128x32xbf16>
    %cst = arith.constant dense<0.000000e+00> : vector<8x128xf32>
    %2 = tpu.matmul %0, %1, %cst {dimension_numbers = #tpu.dot_dimension_numbers<[1], [1], [0], [0], [0, 0, 1, 0], [], []>} : vector<8x32xbf16>, vector<128x32xbf16>, vector<8x128xf32> -> vector<8x128xf32>
    %c0_3 = arith.constant 0 : index
    %c0_4 = arith.constant 0 : index
    %3 = vector.load %arg3[%c0_3, %c0_4] : memref<8x128xf32, #tpu.memory_space<vmem>>, vector<8x128xf32>
    %4 = arith.addf %2, %3 : vector<8x128xf32>
    %c0_5 = arith.constant 0 : index
    %c0_6 = arith.constant 0 : index
    %5 = vector.load %arg4[%c0_5, %c0_6] : memref<8x128xf32, #tpu.memory_space<vmem>>, vector<8x128xf32>
    tpu.vector_store %arg4[%c0_5, %c0_6], %4 {strides = array<i32>} : memref<8x128xf32, #tpu.memory_space<vmem>>, vector<8x128xf32>,
    return
  }
  func.func @transform_0(%arg0: i32) -> (i32, i32) {
    %c0_i32 = arith.constant 0 : i32
    %c0_i32_0 = arith.constant 0 : i32
    return %arg0, %c0_i32 : i32, i32
  }
  func.func @transform_1(%arg0: i32) -> (i32, i32) {
    %c0_i32 = arith.constant 0 : i32
    %c0_i32_0 = arith.constant 0 : i32
    %c0_i32_1 = arith.constant 0 : i32
    return %c0_i32, %c0_i32_0 : i32, i32
  }
  func.func @transform_2(%arg0: i32) -> (i32, i32) {
    %c0_i32 = arith.constant 0 : i32
    %c0_i32_0 = arith.constant 0 : i32
    %c0_i32_1 = arith.constant 0 : i32
    return %c0_i32, %c0_i32_0 : i32, i32
  }
  func.func @transform_3(%arg0: i32) -> (i32, i32) {
    %c0_i32 = arith.constant 0 : i32
    %c0_i32_0 = arith.constant 0 : i32
    return %arg0, %c0_i32 : i32, i32
  }
}

</mosaic_0001>

<llo_original>
// kernel: tpu_custom_call.1
$region0: #{tpu_custom_call.1}
  #allocation0 [shape = 'u32[]', space=smem, size = 0x4, offset = 0x4, fixed_abs, tag = 'smem constant byte address 0x4 - core index']
  #allocation1 [shape = 'u32[144,128]{1,0:T(1,128)}', space=vmem, size = 0x12000, scoped, tag = 'internal scratch']
  %s0 = inlined_call_operand.vmem [shape: bf16[16,32], index: 0, kind: input, shape index: {}]
  %s1 = inlined_call_operand.vmem [shape: bf16[128,32], index: 1, kind: input, shape index: {}]
  %s2 = inlined_call_operand.vmem [shape: f32[8,128], index: 2, kind: input, shape index: {}]
  %s3 = inlined_call_operand.hbm [shape: f32[16,128], index: 3, kind: output, shape index: {}]
  %s4 = sld [smem:[#allocation0]]
  $region45: #{tpu_custom_call.1} parent=0
    _
  %s6 = ssub.s32 1, %s4
  %s7 = scalar_select 0, %s6, %s4
  $region1: #{tpu_custom_call.1} parent=0
    #allocation2 [shape = 'u8[8192]{0}', space=vmem, size = 0x2000, scoped, tag = 'output window, operand 0']
    #allocation3 [shape = 's32[2]{0}', space=sflag, size = 0x8, scoped, tag = 'scoped memory for tpu_custom_call.1']
    %8 = vsyncpa [#allocation3], 0
    %s9 = scalar_lea.sflag [#allocation3], 1
    %10 = vsyncpa %s9, 0
    loop: start=0, step=1, limit=4
    $region2: #{tpu_custom_call.1} parent=1 // loop_pre_header
      _
    $region3: #{tpu_custom_call.1} parent=1 // loop_header
      %s12 = sphi 0, %s16
      %p13 = scmp.ge.s32.totalorder %s12, 4
      %s22 = sphi 0, %s24
      %s25 = sphi 0, %s22
      %s26 = sphi 0, %s25
      %s42 = sphi 0, %s26
      %s46 = sphi 0, %s46
      %s48 = sphi 0, %s46
      %s49 = sphi 0, %s48
      %s63 = sphi 0, %s49
      %s67 = sphi 0, %s67
      %s69 = sphi 0, %s67
      %s70 = sphi 0, %s69
      %s84 = sphi 0, %s70
      %s90 = sphi 0, %s92
      %s93 = sphi 0, %s90
      %s94 = sphi 0, %s93
      %s110 = sphi 0, %s94
    $region4: #{tpu_custom_call.1} parent=1 // loop_header_branch
      %15 = sbr.rel (%p13) target = $region8
    $region5: #{tpu_custom_call.1} parent=1 // loop_body
      %s17 = ssub.s32 %s12, 1
      %s18 = ssub.s32 %s12, 2
      %s19 = sadd.s32 %s12, 1
      %s20 = ssub.s32 %s12, %s19
      %p21 = scmp.eq.s32.totalorder %s20, 0
      %s23 = sadd.s32 %s22, 1
      %s24 = scalar_select %p21, %s22, %s23
      %p27 = pneg %p21
      %p28 = scmp.eq.s32.totalorder %s12, 1
      %p29 = por %p27, %p28
      %p30 = scmp.ne.s32.totalorder %s22, %s25
      %p31 = scmp.eq.s32.totalorder %s12, 0
      %p32 = por %p30, %p31
      %p33 = scmp.ne.s32.totalorder %s22, %s25
      %p34 = scmp.eq.s32.totalorder %s17, 1
      %p35 = por %p33, %p34
      %p36 = scmp.ne.s32.totalorder %s25, %s26
      %p37 = scmp.eq.s32.totalorder %s17, 0
      %p38 = por %p36, %p37
      %p39 = scmp.ne.s32.totalorder %s25, %s26
      %p40 = scmp.eq.s32.totalorder %s18, 1
      %p41 = por %p39, %p40
      %p43 = scmp.ne.s32.totalorder %s26, %s42
      %p44 = scmp.eq.s32.totalorder %s18, 0
      %p45 = por %p43, %p44
      %s47 = sadd.s32 %s46, 1
      %p50 = scmp.eq.s32.totalorder %s12, 1
      %p51 = scmp.ne.s32.totalorder %s46, %s48
      %p52 = scmp.eq.s32.totalorder %s12, 0
      %p53 = por %p51, %p52
      %p54 = scmp.ne.s32.totalorder %s46, %s48
      %p55 = scmp.eq.s32.totalorder %s17, 1
      %p56 = por %p54, %p55
      %p57 = scmp.ne.s32.totalorder %s48, %s49
      %p58 = scmp.eq.s32.totalorder %s17, 0
      %p59 = por %p57, %p58
      %p60 = scmp.ne.s32.totalorder %s48, %s49
      %p61 = scmp.eq.s32.totalorder %s18, 1
      %p62 = por %p60, %p61
      %p64 = scmp.ne.s32.totalorder %s49, %s63
      %p65 = scmp.eq.s32.totalorder %s18, 0
      %p66 = por %p64, %p65
      %s68 = sadd.s32 %s67, 1
      %p71 = scmp.eq.s32.totalorder %s12, 1
      %p72 = scmp.ne.s32.totalorder %s67, %s69
      %p73 = scmp.eq.s32.totalorder %s12, 0
      %p74 = por %p72, %p73
      %p75 = scmp.ne.s32.totalorder %s67, %s69
      %p76 = scmp.eq.s32.totalorder %s17, 1
      %p77 = por %p75, %p76
      %p78 = scmp.ne.s32.totalorder %s69, %s70
      %p79 = scmp.eq.s32.totalorder %s17, 0
      %p80 = por %p78, %p79
      %p81 = scmp.ne.s32.totalorder %s69, %s70
      %p82 = scmp.eq.s32.totalorder %s18, 1
      %p83 = por %p81, %p82
      %p85 = scmp.ne.s32.totalorder %s70, %s84
      %p86 = scmp.eq.s32.totalorder %s18, 0
      %p87 = por %p85, %p86
      %s88 = ssub.s32 %s12, %s19
      %p89 = scmp.eq.s32.totalorder %s88, 0
      %s91 = sadd.s32 %s90, 1
      %s92 = scalar_select %p89, %s90, %s91
      %p95 = pneg %p89
      %p96 = scmp.eq.s32.totalorder %s12, 1
      %p97 = por %p95, %p96
      %p98 = scmp.ne.s32.totalorder %s90, %s93
      %p99 = scmp.eq.s32.totalorder %s12, 0
      %p100 = por %p98, %p99
      %p101 = scmp.ne.s32.totalorder %s90, %s93
      %p102 = scmp.eq.s32.totalorder %s17, 1
      %p103 = por %p101, %p102
      %p104 = scmp.ne.s32.totalorder %s93, %s94
      %p105 = scmp.eq.s32.totalorder %s17, 0
      %p106 = por %p104, %p105
      %p107 = scmp.ne.s32.totalorder %s93, %s94
      %p108 = scmp.eq.s32.totalorder %s18, 1
      %p109 = por %p107, %p108
      %p111 = scmp.ne.s32.totalorder %s94, %s110
      %p112 = scmp.eq.s32.totalorder %s18, 0
      %p113 = por %p111, %p112
      %p114 = scmp.le.s32.totalorder 1, %s12
      %p115 = scmp.lt.s32.totalorder %s12, 3
      %p116 = pnand %p114, %p115
      %p117 = pneg %p116
      // Predicated region
      $region9: #{tpu_custom_call.1} parent=5 // pred_check
        _
      $region10: #{tpu_custom_call.1} parent=5 // pred_check_branch
        %119 = sbr.rel (%p116) target = $region12
      $region11: #{tpu_custom_call.1} parent=5 // pred_region
        %s120 = ssub.s32 %s12, 1
        // Predicated region
        $region13: #{tpu_custom_call.1} parent=11 // pred_check
          %p121 = pneg %p59
        $region14: #{tpu_custom_call.1} parent=11 // pred_check_branch
          %123 = sbr.rel (%p121) target = $region16
        $region15: #{tpu_custom_call.1} parent=11 // pred_region
          _
        $region16: #{tpu_custom_call.1} parent=11 // pred_fallthru
          _
        // Predicated region
        $region17: #{tpu_custom_call.1} parent=11 // pred_check
          %p124 = pneg %p80
        $region18: #{tpu_custom_call.1} parent=11 // pred_check_branch
          %126 = sbr.rel (%p124) target = $region20
        $region19: #{tpu_custom_call.1} parent=11 // pred_region
          _
        $region20: #{tpu_custom_call.1} parent=11 // pred_fallthru
          _
      $region12: #{tpu_custom_call.1} parent=5 // pred_fallthru
        _
      %p127 = scmp.lt.s32.totalorder %s12, 2
      // Predicated region
      $region21: #{tpu_custom_call.1} parent=5 // pred_check
        %p128 = pneg %p127
      $region22: #{tpu_custom_call.1} parent=5 // pred_check_branch
        %130 = sbr.rel (%p128) target = $region24
      $region23: #{tpu_custom_call.1} parent=5 // pred_region
        // Predicated region
        $region25: #{tpu_custom_call.1} parent=23 // pred_check
          %p131 = pneg %p32
        $region26: #{tpu_custom_call.1} parent=23 // pred_check_branch
          %133 = sbr.rel (%p131) target = $region28
        $region27: #{tpu_custom_call.1} parent=23 // pred_region
          %p134 = scmp.lt.s32.totalorder %s12, 1
          %s135 = scalar_select %p134, %s12, 1
          %s136 = smul.addr %s135, 4
          %s137 = scalar_lea.vmem %s0, %s136
        $region28: #{tpu_custom_call.1} parent=23 // pred_fallthru
          _
      $region24: #{tpu_custom_call.1} parent=5 // pred_fallthru
        _
      %p138 = scmp.le.s32.totalorder 1, %s12
      %p139 = scmp.lt.s32.totalorder %s12, 3
      %p140 = pnand %p138, %p139
      %p141 = pneg %p140
      // Predicated region
      $region29: #{tpu_custom_call.1} parent=5 // pred_check
        _
      $region30: #{tpu_custom_call.1} parent=5 // pred_check_branch
        %143 = sbr.rel (%p140) target = $region32
      $region31: #{tpu_custom_call.1} parent=5 // pred_region
        %s144 = ssub.s32 %s12, 1
        %p145 = scmp.lt.s32.totalorder %s17, 1
        %s146 = scalar_select %p145, %s17, 1
        %s147 = smul.addr %s146, 4
        %s148 = scalar_lea.vmem %s0, %s147
        %p149 = pneg %p38
        %p150 = pneg %p35
        %p151 = pneg %p59
        %p152 = pneg %p56
        %p153 = pneg %p80
        %p154 = pneg %p77
        %p155 = pneg %p106
        %p156 = pneg %p103
        %s157 = sand.u32 %s93, 1
        %s158 = scalar_lea.sflag [#allocation3], %s157
        %s159 = sand.u32 %s93, 1
        %s160 = smul.addr %s159, 8
        %s161 = scalar_lea.vmem [#allocation2], %s160
        %p162 = scmp.lt.s32.totalorder %s17, 1
        %s163 = scalar_select %p162, %s17, 1
        %s164 = smul.addr %s163, 4
        %s165 = scalar_lea.vmem %s0, %s164
        %v167 = vld [vmem:[%s165] sm:$0xf]
        %v168 = vld [vmem:[%s1] sm:$0xf]
        %v169 = vld [vmem:[%s1 + $0x4] sm:$0xf]
        %v170 = vld [vmem:[%s1 + $0x8] sm:$0xf]
        %v171 = vld [vmem:[%s1 + $0xc] sm:$0xf]
        %v172 = vld [vmem:[%s1 + $0x10] sm:$0xf]
        %v173 = vld [vmem:[%s1 + $0x14] sm:$0xf]
        %v174 = vld [vmem:[%s1 + $0x18] sm:$0xf]
        %v175 = vld [vmem:[%s1 + $0x1c] sm:$0xf]
        %v176 = vld [vmem:[%s1 + $0x20] sm:$0xf]
        %v177 = vld [vmem:[%s1 + $0x24] sm:$0xf]
        %v178 = vld [vmem:[%s1 + $0x28] sm:$0xf]
        %v179 = vld [vmem:[%s1 + $0x2c] sm:$0xf]
        %v180 = vld [vmem:[%s1 + $0x30] sm:$0xf]
        %v181 = vld [vmem:[%s1 + $0x34] sm:$0xf]
        %v182 = vld [vmem:[%s1 + $0x38] sm:$0xf]
        %v183 = vld [vmem:[%s1 + $0x3c] sm:$0xf]
        %v184 = vld [vmem:[%s2] sm:$0xff]
        %v201 = vunpack.c.l.b16 %v168
        %v202 = vunpack.c.l.b16 %v169
        %v203 = vunpack.c.l.b16 %v170
        %v204 = vunpack.c.l.b16 %v171
        %v205 = vunpack.c.l.b16 %v172
        %v206 = vunpack.c.l.b16 %v173
        %v207 = vunpack.c.l.b16 %v174
        %v208 = vunpack.c.l.b16 %v175
        %v209 = vunpack.c.l.b16 %v176
        %v210 = vunpack.c.l.b16 %v177
        %v211 = vunpack.c.l.b16 %v178
        %v212 = vunpack.c.l.b16 %v179
        %v213 = vunpack.c.l.b16 %v180
        %v214 = vunpack.c.l.b16 %v181
        %v215 = vunpack.c.l.b16 %v182
        %v216 = vunpack.c.l.b16 %v183
        %v217 = vpack.c.b16 %v202, %v201
        %v218 = vpack.c.b16 %v204, %v203
        %v219 = vpack.c.b16 %v206, %v205
        %v220 = vpack.c.b16 %v208, %v207
        %v221 = vpack.c.b16 %v210, %v209
        %v222 = vpack.c.b16 %v212, %v211
        %v223 = vpack.c.b16 %v214, %v213
        %v224 = vpack.c.b16 %v216, %v215
        %vm225 = vcmask 261120
        %v227 = vsel %vm225, %v167, 0
        %v230 = vsel %vm225, %v217, 0
        %v233 = vsel %vm225, %v218, 0
        %v236 = vsel %vm225, %v219, 0
        %v239 = vsel %vm225, %v220, 0
        %v242 = vsel %vm225, %v221, 0
        %v245 = vsel %vm225, %v222, 0
        %v248 = vsel %vm225, %v223, 0
        %v251 = vsel %vm225, %v224, 0
        %253 = vmatprep.subr.bf16.mxu0 0
        %254 = vmatpush1.bf16.xpose.msra.mxu0 %v251
        %255 = vmatprep.subr.bf16.mxu0 0
        %256 = vmatpush1.bf16.xpose.msra.mxu0 %v248
        %257 = vmatprep.subr.bf16.mxu0 0
        %258 = vmatpush1.bf16.xpose.msra.mxu0 %v245
        %259 = vmatprep.subr.bf16.mxu0 0
        %260 = vmatpush1.bf16.xpose.msra.mxu0 %v242
        %261 = vmatprep.subr.bf16.mxu0 0
        %262 = vmatpush1.bf16.xpose.msra.mxu0 %v239
        %263 = vmatprep.subr.bf16.mxu0 0
        %264 = vmatpush1.bf16.xpose.msra.mxu0 %v236
        %265 = vmatprep.subr.bf16.mxu0 0
        %266 = vmatpush1.bf16.xpose.msra.mxu0 %v233
        %267 = vmatprep.subr.bf16.mxu0 0
        %268 = vmatpush1.bf16.xpose.msra.mxu0 %v230
        %269 = vmatprep.subr.bf16.mxu0 0
        %270 = vmatpush2.bf16.xpose.msra.mxu0 0
        %271 = vmatprep.subr.bf16.mxu0 0
        %272 = vmatpush2.bf16.xpose.msra.mxu0 0
        %273 = vmatprep.subr.bf16.mxu0 0
        %274 = vmatpush2.bf16.xpose.msra.mxu0 0
        %275 = vmatprep.subr.bf16.mxu0 0
        %276 = vmatpush2.bf16.xpose.msra.mxu0 0
        %277 = vmatprep.subr.bf16.mxu0 0
        %278 = vmatpush2.bf16.xpose.msra.mxu0 0
        %279 = vmatprep.subr.bf16.mxu0 0
        %280 = vmatpush2.bf16.xpose.msra.mxu0 0
        %281 = vmatprep.subr.bf16.mxu0 0
        %282 = vmatpush2.bf16.xpose.msra.mxu0 0
        %283 = vmatprep.subr.bf16.mxu0 0
        %284 = vmatpush2.bf16.xpose.msra.mxu0 0
        %285 = vmatprep.mubr.bf16.mxu0 0
        %286 = vmatmul.mubr.bf16.gmra.mxu0 %v227
        %v287 = vpop.f32.mrf.mxu0
        %v288 = vadd.f32 %v184, %v287
        %v289 = vpop.f32.mrf.mxu0
        %v290 = vpop.f32.mrf.mxu0
        %v291 = vpop.f32.mrf.mxu0
        %292 = vdwg.mxu0
        %293 = vst [vmem:[%s161] sm:$0xff] %v288
        %s294 = sand.u32 %s93, 1
        %s295 = scalar_lea.sflag [#allocation3], %s294
        %s296 = sand.u32 %s93, 1
        %s297 = smul.addr %s296, 8
        %s298 = scalar_lea.vmem [#allocation2], %s297
        // Predicated region
        $region33: #{tpu_custom_call.1} parent=31 // pred_check
          %p299 = pneg %p103
        $region34: #{tpu_custom_call.1} parent=31 // pred_check_branch
          %301 = sbr.rel (%p299) target = $region36
        $region35: #{tpu_custom_call.1} parent=31 // pred_region
          %s303 = ssub.s32 128, 128
          %304 = vsyncadd %s295, %s303
          %s305 = smul.addr %s17, 128
          %s306 = scalar_lea.hbm %s3, %s305
          %s308 = sshll.u32 %s298, 4
          %s309 = int_to_ptr.vmem [resolvable:$true] %s308
          %311 = dma.vmem_to_hbm [thread:$0]  %s309, 128, %s306, %s295
        $region36: #{tpu_custom_call.1} parent=31 // pred_fallthru
          _
      $region32: #{tpu_custom_call.1} parent=5 // pred_fallthru
        _
      %p312 = scmp.le.s32.totalorder 2, %s12
      // Predicated region
      $region37: #{tpu_custom_call.1} parent=5 // pred_check
        %p313 = pneg %p312
      $region38: #{tpu_custom_call.1} parent=5 // pred_check_branch
        %315 = sbr.rel (%p313) target = $region40
      $region39: #{tpu_custom_call.1} parent=5 // pred_region
        %s316 = ssub.s32 %s12, 2
        // Predicated region
        $region41: #{tpu_custom_call.1} parent=39 // pred_check
          %p317 = pneg %p109
        $region42: #{tpu_custom_call.1} parent=39 // pred_check_branch
          %319 = sbr.rel (%p317) target = $region44
        $region43: #{tpu_custom_call.1} parent=39 // pred_region
          %s320 = sand.u32 %s94, 1
          %s321 = scalar_lea.sflag [#allocation3], %s320
          %s322 = sand.u32 %s94, 1
          %s323 = smul.addr %s322, 8
          %s324 = scalar_lea.vmem [#allocation2], %s323
          %325 = dma.done %s321, 128
        $region44: #{tpu_custom_call.1} parent=39 // pred_fallthru
          _
      $region40: #{tpu_custom_call.1} parent=5 // pred_fallthru
        _
    $region6: #{tpu_custom_call.1} parent=1 // loop_footer
      %s16 = sadd.s32 1, %s12
    $region7: #{tpu_custom_call.1} parent=1 // loop_footer_branch
      %11 = sbr.rel target = $region3
    $region8: #{tpu_custom_call.1} parent=1 // loop_exit
      _
    %326 = vsyncpa [#allocation3], 1
    %s327 = scalar_lea.sflag [#allocation3], 1
    %328 = vsyncpa %s327, 1

</llo_original>
